<compile_context>
chip_gen: v5e
topology: v5e:2x2
jax: 0.10.0
libtpu: 0.0.40
codegen_flags: <defaults>
</compile_context>

<pallas_src>
import functools

import jax
import jax.numpy as jnp
from jax import lax
from jax.experimental import pallas as pl
from jax.experimental.pallas import tpu as pltpu


def _mask_pool_kernel(x_ref, m_ref, o_ref, acc_ref, cnt_ref, *, hw_total, tile_hw):
    # x_ref: (1, C, tile_hw)   m_ref: (1, tile_q, tile_hw)   o_ref: (1, tile_q, C)
    # acc_ref: (tile_q, C) f32 scratch   cnt_ref: (tile_q, 1) f32 scratch
    k = pl.program_id(2)

    @pl.when(k == 0)
    def _init():
        acc_ref[...] = jnp.zeros_like(acc_ref)
        cnt_ref[...] = jnp.zeros_like(cnt_ref)

    x = x_ref[0]            # (C, tile_hw)
    m = m_ref[0]            # (tile_q, tile_hw)

    mbool = m > 0           # (tile_q, tile_hw) bool

    if hw_total % tile_hw != 0:
        # Mask the out-of-bounds tail of the last HW block (static branch).
        lane = lax.broadcasted_iota(jnp.int32, (1, tile_hw), 1)
        valid = (k * tile_hw + lane) < hw_total              # (1, tile_hw)
        mbool = jnp.logical_and(mbool, valid)
        x = jnp.where(valid, x, jnp.zeros_like(x))           # keep garbage out of MXU

    # Per-query hit count, accumulated in f32 (normalization deferred to the end).
    ones = jnp.where(mbool, jnp.float32(1.0), jnp.float32(0.0))
    cnt_ref[...] += jnp.sum(ones, axis=-1, keepdims=True)

    # (tile_q, HW) x (C, HW) contracted over HW -> (tile_q, C); no transpose copy.
    mb = mbool.astype(x.dtype)
    acc_ref[...] += lax.dot_general(
        mb, x,
        dimension_numbers=(((1,), (1,)), ((), ())),
        preferred_element_type=jnp.float32)

    @pl.when(k == pl.num_programs(2) - 1)
    def _finalize():
        inv = pl.reciprocal(cnt_ref[...] + jnp.float32(1e-8), approx=False)  # (tile_q, 1)
        o_ref[0] = (acc_ref[...] * inv).astype(o_ref.dtype)


def _pick_tile(total, target, align):
    """Full extent if it fits the target, otherwise an aligned tile <= target."""
    if total <= target:
        return total
    return max((target // align) * align, align)


def mask_pooling(x, mask, *, tile_q=None, tile_hw=None,
                 vmem_limit_bytes=64 * 1024 * 1024):
    """x: (B, C, H, W), mask: (B, Q, H, W) -> (B, Q, C)."""
    assert x.shape[-2:] == mask.shape[-2:]
    B, C, H, W = x.shape
    _, Q, _, _ = mask.shape
    HW = H * W

    if tile_hw is None:
        tile_hw = _pick_tile(HW, 2048, 128)   # lane-aligned contraction tile
    if tile_q is None:
        tile_q = _pick_tile(Q, 128, 8)        # sublane-aligned query tile

    x_f = x.reshape(B, C, HW)
    m_f = mask.reshape(B, Q, HW)

    grid = (B, pl.cdiv(Q, tile_q), pl.cdiv(HW, tile_hw))

    kernel = functools.partial(_mask_pool_kernel, hw_total=HW, tile_hw=tile_hw)

    x_bytes = x_f.size * jnp.dtype(x.dtype).itemsize
    m_bytes = m_f.size * jnp.dtype(mask.dtype).itemsize
    o_bytes = B * Q * C * jnp.dtype(x.dtype).itemsize
    cost = pl.CostEstimate(
        flops=2 * B * Q * C * HW,
        transcendentals=0,
        bytes_accessed=x_bytes + m_bytes + o_bytes,
    )

    return pl.pallas_call(
        kernel,
        out_shape=jax.ShapeDtypeStruct((B, Q, C), x.dtype),
        grid_spec=pltpu.PrefetchScalarGridSpec(
            num_scalar_prefetch=0,
            grid=grid,
            in_specs=[
                pl.BlockSpec((1, C, tile_hw), lambda b, q, k: (b, 0, k)),
                pl.BlockSpec((1, tile_q, tile_hw), lambda b, q, k: (b, q, k)),
            ],
            out_specs=pl.BlockSpec((1, tile_q, C), lambda b, q, k: (b, q, 0)),
            scratch_shapes=[
                pltpu.VMEM((tile_q, C), jnp.float32),   # (Q, C) accumulator
                pltpu.VMEM((tile_q, 1), jnp.float32),   # per-query hit count
            ],
        ),
        compiler_params=pltpu.CompilerParams(
            dimension_semantics=("parallel", "parallel", "arbitrary"),
            vmem_limit_bytes=vmem_limit_bytes,
        ),
        cost_estimate=cost,
    )(x_f, m_f)


def _reference(x, mask):
    mb = (mask > 0).astype(mask.dtype)
    denorm = mb.sum(axis=(-1, -2), keepdims=True) + 1e-8
    return jnp.einsum('bchw,bqhw->bqc', x, mb / denorm)


if __name__ == "__main__":
    key = jax.random.PRNGKey(0)
    kx, km = jax.random.split(key)

    B, C, H, W, Q = 2, 4, 16, 16, 8
    x = jax.random.normal(kx, (B, C, H, W), dtype=jnp.float32)
    # mask logits: mix of positive/negative so (mask > 0) is nontrivial
    mask = jax.random.normal(km, (B, Q, H, W), dtype=jnp.float32)

    out = mask_pooling(x, mask)
    out = jax.block_until_ready(out)

    ref = _reference(x, mask)
    assert out.shape == (B, Q, C)
    assert jnp.allclose(out, ref, atol=1e-5, rtol=1e-5)

    print("KERNEL_OK")
</pallas_src>

<mosaic_0001>
module attributes {stable_mosaic.version = 11 : i64} {
  func.func @_mask_pool_kernel(%arg0: i32, %arg1: i32, %arg2: i32, %arg3: memref<1x4x256xf32, #tpu.memory_space<vmem>>, %arg4: memref<1x8x256xf32, #tpu.memory_space<vmem>>, %arg5: memref<1x8x4xf32, #tpu.memory_space<vmem>>, %arg6: memref<8x4xf32, #tpu.memory_space<vmem>>, %arg7: memref<8x1xf32, #tpu.memory_space<vmem>>) attributes {dimension_semantics = [#tpu.dimension_semantics<parallel>, #tpu.dimension_semantics<parallel>, #tpu.dimension_semantics<arbitrary>], iteration_bounds = array<i64: 2, 1, 1>, scalar_prefetch = 0 : i64, scratch_operands = 2 : i64, tpu.core_type = #tpu.core_type<tc>, window_params = [{transform_indices = @transform_0, window_bounds = array<i64: 1, 4, 256>}, {transform_indices = @transform_1, window_bounds = array<i64: 1, 8, 256>}, {transform_indices = @transform_2, window_bounds = array<i64: 1, 8, 4>}]} {
    %c0_i32 = arith.constant 0 : i32
    %0 = arith.cmpi eq, %arg2, %c0_i32 : i32
    %1 = arith.extui %0 : i1 to i32
    %c0_i32_0 = arith.constant 0 : i32
    %2 = arith.cmpi ne, %1, %c0_i32_0 : i32
    scf.if %2 {
      %cst_20 = arith.constant 0.000000e+00 : f32
      %26 = vector.broadcast %cst_20 : f32 to vector<8x4xf32>
      %c0_21 = arith.constant 0 : index
      %c0_22 = arith.constant 0 : index
      %27 = vector.load %arg6[%c0_21, %c0_22] : memref<8x4xf32, #tpu.memory_space<vmem>>, vector<8x4xf32>
      tpu.vector_store %arg6[%c0_21, %c0_22], %26 {strides = array<i32>} : memref<8x4xf32, #tpu.memory_space<vmem>>, vector<8x4xf32>,
      %cst_23 = arith.constant 0.000000e+00 : f32
      %28 = vector.broadcast %cst_23 : f32 to vector<8x1xf32>
      %c0_24 = arith.constant 0 : index
      %c0_25 = arith.constant 0 : index
      %29 = vector.load %arg7[%c0_24, %c0_25] : memref<8x1xf32, #tpu.memory_space<vmem>>, vector<8x1xf32>
      tpu.vector_store %arg7[%c0_24, %c0_25], %28 {strides = array<i32>} : memref<8x1xf32, #tpu.memory_space<vmem>>, vector<8x1xf32>,
    } else {
    }
    %c0 = arith.constant 0 : index
    %c0_1 = arith.constant 0 : index
    %c0_2 = arith.constant 0 : index
    %3 = vector.load %arg3[%c0, %c0_1, %c0_2] : memref<1x4x256xf32, #tpu.memory_space<vmem>>, vector<1x4x256xf32>
    %4 = vector.shape_cast %3 : vector<1x4x256xf32> to vector<4x256xf32>
    %c0_3 = arith.constant 0 : index
    %c0_4 = arith.constant 0 : index
    %c0_5 = arith.constant 0 : index
    %5 = vector.load %arg4[%c0_3, %c0_4, %c0_5] : memref<1x8x256xf32, #tpu.memory_space<vmem>>, vector<1x8x256xf32>
    %6 = vector.shape_cast %5 : vector<1x8x256xf32> to vector<8x256xf32>
    %cst = arith.constant 0.000000e+00 : f32
    %7 = vector.broadcast %cst : f32 to vector<8x256xf32>
    %8 = arith.cmpf ogt, %6, %7 : vector<8x256xf32>
    %cst_6 = arith.constant 1.000000e+00 : f32
    %cst_7 = arith.constant 0.000000e+00 : f32
    %9 = vector.broadcast %cst_6 : f32 to vector<8x256xf32>
    %10 = vector.broadcast %cst_7 : f32 to vector<8x256xf32>
    %11 = arith.select %8, %9, %10 : vector<8x256xi1>, vector<8x256xf32>
    %c0_8 = arith.constant 0 : index
    %c0_9 = arith.constant 0 : index
    %12 = vector.load %arg7[%c0_8, %c0_9] : memref<8x1xf32, #tpu.memory_space<vmem>>, vector<8x1xf32>
    %cst_10 = arith.constant dense<0.000000e+00> : vector<8xf32>
    %13 = vector.multi_reduction <add>, %11, %cst_10 [1] : vector<8x256xf32> to vector<8xf32>
    %14 = vector.shape_cast %13 : vector<8xf32> to vector<8x1xf32>
    %15 = arith.addf %12, %14 : vector<8x1xf32>
    %c0_11 = arith.constant 0 : index
    %c0_12 = arith.constant 0 : index
    %16 = vector.load %arg7[%c0_11, %c0_12] : memref<8x1xf32, #tpu.memory_space<vmem>>, vector<8x1xf32>
    tpu.vector_store %arg7[%c0_11, %c0_12], %15 {strides = array<i32>} : memref<8x1xf32, #tpu.memory_space<vmem>>, vector<8x1xf32>,
    %17 = arith.extui %8 : vector<8x256xi1> to vector<8x256xi32>
    %18 = arith.sitofp %17 : vector<8x256xi32> to vector<8x256xf32>
    %c0_13 = arith.constant 0 : index
    %c0_14 = arith.constant 0 : index
    %19 = vector.load %arg6[%c0_13, %c0_14] : memref<8x4xf32, #tpu.memory_space<vmem>>, vector<8x4xf32>
    %cst_15 = arith.constant dense<0.000000e+00> : vector<8x4xf32>
    %20 = tpu.matmul %18, %4, %cst_15 {dimension_numbers = #tpu.dot_dimension_numbers<[1], [1], [0], [0], [0, 0, 1, 0], [], []>} : vector<8x256xf32>, vector<4x256xf32>, vector<8x4xf32> -> vector<8x4xf32>
    %21 = arith.addf %19, %20 : vector<8x4xf32>
    %c0_16 = arith.constant 0 : index
    %c0_17 = arith.constant 0 : index
    %22 = vector.load %arg6[%c0_16, %c0_17] : memref<8x4xf32, #tpu.memory_space<vmem>>, vector<8x4xf32>
    tpu.vector_store %arg6[%c0_16, %c0_17], %21 {strides = array<i32>} : memref<8x4xf32, #tpu.memory_space<vmem>>, vector<8x4xf32>,
    %c0_i32_18 = arith.constant 0 : i32
    %23 = arith.cmpi eq, %arg2, %c0_i32_18 : i32
    %24 = arith.extui %23 : i1 to i32
    %c0_i32_19 = arith.constant 0 : i32
    %25 = arith.cmpi ne, %24, %c0_i32_19 : i32
    scf.if %25 {
      %c0_20 = arith.constant 0 : index
      %c0_21 = arith.constant 0 : index
      %26 = vector.load %arg7[%c0_20, %c0_21] : memref<8x1xf32, #tpu.memory_space<vmem>>, vector<8x1xf32>
      %cst_22 = arith.constant 9.99999993E-9 : f32
      %27 = vector.broadcast %cst_22 : f32 to vector<8x1xf32>
      %28 = arith.addf %26, %27 : vector<8x1xf32>
      %29 = tpu.reciprocal %28 : vector<8x1xf32> -> vector<8x1xf32>
      %c0_23 = arith.constant 0 : index
      %c0_24 = arith.constant 0 : index
      %30 = vector.load %arg6[%c0_23, %c0_24] : memref<8x4xf32, #tpu.memory_space<vmem>>, vector<8x4xf32>
      %31 = vector.broadcast %29 : vector<8x1xf32> to vector<8x4xf32>
      %32 = arith.mulf %30, %31 : vector<8x4xf32>
      %c0_25 = arith.constant 0 : index
      %c0_26 = arith.constant 0 : index
      %c0_27 = arith.constant 0 : index
      %33 = vector.load %arg5[%c0_25, %c0_26, %c0_27] : memref<1x8x4xf32, #tpu.memory_space<vmem>>, vector<1x8x4xf32>
      %34 = vector.shape_cast %33 : vector<1x8x4xf32> to vector<8x4xf32>
      %35 = vector.shape_cast %32 : vector<8x4xf32> to vector<1x8x4xf32>
      tpu.vector_store %arg5[%c0_25, %c0_26, %c0_27], %35 {strides = array<i32>} : memref<1x8x4xf32, #tpu.memory_space<vmem>>, vector<1x8x4xf32>,
    } else {
    }
    return
  }
  func.func @transform_0(%arg0: i32, %arg1: i32, %arg2: i32) -> (i32, i32, i32) {
    %c0_i32 = arith.constant 0 : i32
    %c0_i32_0 = arith.constant 0 : i32
    return %arg0, %c0_i32, %arg2 : i32, i32, i32
  }
  func.func @transform_1(%arg0: i32, %arg1: i32, %arg2: i32) -> (i32, i32, i32) {
    %c0_i32 = arith.constant 0 : i32
    return %arg0, %arg1, %arg2 : i32, i32, i32
  }
  func.func @transform_2(%arg0: i32, %arg1: i32, %arg2: i32) -> (i32, i32, i32) {
    %c0_i32 = arith.constant 0 : i32
    %c0_i32_0 = arith.constant 0 : i32
    return %arg0, %arg1, %c0_i32 : i32, i32, i32
  }
}

</mosaic_0001>

<llo_original>
// kernel: tpu_custom_call.1
$region0: #{tpu_custom_call.1}
  #allocation0 [shape = 'u32[]', space=smem, size = 0x4, offset = 0x4, fixed_abs, tag = 'smem constant byte address 0x4 - core index']
  #allocation1 [shape = 'u32[72,128]{1,0:T(1,128)}', space=vmem, size = 0x9000, scoped, tag = 'internal scratch']
  #allocation2 [shape = 'f32[8,4]{1,0:T(8,128)}', space=vmem, size = 0x1000, scoped, tag = 'scratch operand']
  #allocation3 [shape = 'f32[8,1]{1,0:T(8,128)}', space=vmem, size = 0x1000, scoped, tag = 'scratch operand']
  %s0 = inlined_call_operand.hbm [shape: f32[2,4,256], index: 0, kind: input, shape index: {}]
  %s1 = inlined_call_operand.hbm [shape: f32[2,8,256], index: 1, kind: input, shape index: {}]
  %s2 = inlined_call_operand.vmem [shape: f32[2,8,4], index: 2, kind: output, shape index: {}]
  %s3 = sld [smem:[#allocation0]]
  $region57: #{tpu_custom_call.1} parent=0
    _
  %s5 = ssub.s32 1, %s3
  %s6 = scalar_select 0, %s5, %s3
  $region1: #{tpu_custom_call.1} parent=0
    #allocation4 [shape = 'u8[8192]{0}', space=vmem, size = 0x2000, scoped, tag = 'input window, operand 0']
    #allocation5 [shape = 's32[2]{0}', space=sflag, size = 0x8, scoped, tag = 'scoped memory for tpu_custom_call.1']
    #allocation6 [shape = 'u8[16384]{0}', space=vmem, size = 0x4000, scoped, tag = 'input window, operand 1']
    #allocation7 [shape = 's32[2]{0}', space=sflag, size = 0x8, scoped, tag = 'scoped memory for tpu_custom_call.1']
    %7 = vsyncpa [#allocation5], 0
    %s8 = scalar_lea.sflag [#allocation5], 1
    %9 = vsyncpa %s8, 0
    %10 = vsyncpa [#allocation7], 0
    %s11 = scalar_lea.sflag [#allocation7], 1
    %12 = vsyncpa %s11, 0
    loop: start=0, step=1, limit=4
    $region2: #{tpu_custom_call.1} parent=1 // loop_pre_header
      _
    $region3: #{tpu_custom_call.1} parent=1 // loop_header
      %s14 = sphi 0, %s18
      %p15 = scmp.ge.s32.totalorder %s14, 4
      %s21 = sphi 0, %s40
      %s22 = sphi 0, %s36
      %s23 = sphi 0, %s32
      %s24 = sphi 0, %s21
      %s25 = sphi 0, %s22
      %s26 = sphi 0, %s23
      %s27 = sphi 0, %s24
      %s28 = sphi 0, %s25
      %s29 = sphi 0, %s26
      %s45 = sphi 0, %s47
      %s48 = sphi 0, %s45
      %s49 = sphi 0, %s48
      %s65 = sphi 0, %s49
      %s75 = sphi 0, %s77
      %s78 = sphi 0, %s75
      %s79 = sphi 0, %s78
      %s95 = sphi 0, %s79
      %s103 = sphi 0, %s105
      %s106 = sphi 0, %s103
      %s107 = sphi 0, %s106
      %s123 = sphi 0, %s107
    $region4: #{tpu_custom_call.1} parent=1 // loop_header_branch
      %17 = sbr.rel (%p15) target = $region8
    $region5: #{tpu_custom_call.1} parent=1 // loop_body
      %s19 = ssub.s32 %s14, 1
      %s20 = ssub.s32 %s14, 2
      %s30 = sadd.s32 1, %s23
      %p31 = scmp.ge.s32.totalorder %s30, 1
      %s32 = scalar_select %p31, 0, %s30
      %s33 = sadd.s32 1, %s22
      %s34 = scalar_select %p31, %s33, %s22
      %p35 = scmp.ge.s32.totalorder %s34, 1
      %s36 = scalar_select %p35, 0, %s34
      %s37 = sadd.s32 1, %s21
      %s38 = scalar_select %p35, %s37, %s21
      %p39 = scmp.ge.s32.totalorder %s38, 2
      %s40 = scalar_select %p39, 0, %s38
      %s41 = ssub.s32 %s21, %s40
      %s42 = ssub.s32 %s23, %s32
      %s43 = sor.u32 %s41, %s42
      %p44 = scmp.eq.s32.totalorder %s43, 0
      %s46 = sadd.s32 %s45, 1
      %s47 = scalar_select %p44, %s45, %s46
      %p50 = pneg %p44
      %p51 = scmp.eq.s32.totalorder %s14, 1
      %p52 = por %p50, %p51
      %p53 = scmp.ne.s32.totalorder %s45, %s48
      %p54 = scmp.eq.s32.totalorder %s14, 0
      %p55 = por %p53, %p54
      %p56 = scmp.ne.s32.totalorder %s45, %s48
      %p57 = scmp.eq.s32.totalorder %s19, 1
      %p58 = por %p56, %p57
      %p59 = scmp.ne.s32.totalorder %s48, %s49
      %p60 = scmp.eq.s32.totalorder %s19, 0
      %p61 = por %p59, %p60
      %p62 = scmp.ne.s32.totalorder %s48, %s49
      %p63 = scmp.eq.s32.totalorder %s20, 1
      %p64 = por %p62, %p63
      %p66 = scmp.ne.s32.totalorder %s49, %s65
      %p67 = scmp.eq.s32.totalorder %s20, 0
      %p68 = por %p66, %p67
      %s69 = ssub.s32 %s21, %s40
      %s70 = ssub.s32 %s22, %s36
      %s71 = sor.u32 %s69, %s70
      %s72 = ssub.s32 %s23, %s32
      %s73 = sor.u32 %s71, %s72
      %p74 = scmp.eq.s32.totalorder %s73, 0
      %s76 = sadd.s32 %s75, 1
      %s77 = scalar_select %p74, %s75, %s76
      %p80 = pneg %p74
      %p81 = scmp.eq.s32.totalorder %s14, 1
      %p82 = por %p80, %p81
      %p83 = scmp.ne.s32.totalorder %s75, %s78
      %p84 = scmp.eq.s32.totalorder %s14, 0
      %p85 = por %p83, %p84
      %p86 = scmp.ne.s32.totalorder %s75, %s78
      %p87 = scmp.eq.s32.totalorder %s19, 1
      %p88 = por %p86, %p87
      %p89 = scmp.ne.s32.totalorder %s78, %s79
      %p90 = scmp.eq.s32.totalorder %s19, 0
      %p91 = por %p89, %p90
      %p92 = scmp.ne.s32.totalorder %s78, %s79
      %p93 = scmp.eq.s32.totalorder %s20, 1
      %p94 = por %p92, %p93
      %p96 = scmp.ne.s32.totalorder %s79, %s95
      %p97 = scmp.eq.s32.totalorder %s20, 0
      %p98 = por %p96, %p97
      %s99 = ssub.s32 %s21, %s40
      %s100 = ssub.s32 %s22, %s36
      %s101 = sor.u32 %s99, %s100
      %p102 = scmp.eq.s32.totalorder %s101, 0
      %s104 = sadd.s32 %s103, 1
      %s105 = scalar_select %p102, %s103, %s104
      %p108 = pneg %p102
      %p109 = scmp.eq.s32.totalorder %s14, 1
      %p110 = por %p108, %p109
      %p111 = scmp.ne.s32.totalorder %s103, %s106
      %p112 = scmp.eq.s32.totalorder %s14, 0
      %p113 = por %p111, %p112
      %p114 = scmp.ne.s32.totalorder %s103, %s106
      %p115 = scmp.eq.s32.totalorder %s19, 1
      %p116 = por %p114, %p115
      %p117 = scmp.ne.s32.totalorder %s106, %s107
      %p118 = scmp.eq.s32.totalorder %s19, 0
      %p119 = por %p117, %p118
      %p120 = scmp.ne.s32.totalorder %s106, %s107
      %p121 = scmp.eq.s32.totalorder %s20, 1
      %p122 = por %p120, %p121
      %p124 = scmp.ne.s32.totalorder %s107, %s123
      %p125 = scmp.eq.s32.totalorder %s20, 0
      %p126 = por %p124, %p125
      %p127 = scmp.le.s32.totalorder 1, %s14
      %p128 = scmp.lt.s32.totalorder %s14, 3
      %p129 = pnand %p127, %p128
      %p130 = pneg %p129
      // Predicated region
      $region9: #{tpu_custom_call.1} parent=5 // pred_check
        _
      $region10: #{tpu_custom_call.1} parent=5 // pred_check_branch
        %132 = sbr.rel (%p129) target = $region12
      $region11: #{tpu_custom_call.1} parent=5 // pred_region
        %s133 = ssub.s32 %s14, 1
      $region12: #{tpu_custom_call.1} parent=5 // pred_fallthru
        _
      %p134 = scmp.lt.s32.totalorder %s14, 2
      // Predicated region
      $region13: #{tpu_custom_call.1} parent=5 // pred_check
        %p135 = pneg %p134
      $region14: #{tpu_custom_call.1} parent=5 // pred_check_branch
        %137 = sbr.rel (%p135) target = $region16
      $region15: #{tpu_custom_call.1} parent=5 // pred_region
        // Predicated region
        $region17: #{tpu_custom_call.1} parent=15 // pred_check
          %p138 = pneg %p55
        $region18: #{tpu_custom_call.1} parent=15 // pred_check_branch
          %140 = sbr.rel (%p138) target = $region20
        $region19: #{tpu_custom_call.1} parent=15 // pred_region
          %s141 = sand.u32 %s45, 1
          %s142 = scalar_lea.sflag [#allocation5], %s141
          %s143 = sand.u32 %s45, 1
          %s144 = smul.addr %s143, 8
          %s145 = scalar_lea.vmem [#allocation4], %s144
          %s146 = smul.u32 2, %s23
          %148 = vsyncadd %s142, 0
          %s149 = smul.addr %s21, 2
          %s150 = sadd.s32 %s146, %s149
          %s151 = smul.addr %s150, 4
          %s152 = scalar_lea.hbm %s0, %s151
          %s154 = sshll.u32 %s152, 4
          %s155 = int_to_ptr.hbm [resolvable:$true] %s154
          %s156 = sshll.u32 %s145, 4
          %s157 = int_to_ptr.vmem [resolvable:$true] %s156
          %159 = dma.hbm_to_vmem [thread:$0]  %s155, 128, %s157, %s142
        $region20: #{tpu_custom_call.1} parent=15 // pred_fallthru
          _
        // Predicated region
        $region21: #{tpu_custom_call.1} parent=15 // pred_check
          %p160 = pneg %p85
        $region22: #{tpu_custom_call.1} parent=15 // pred_check_branch
          %162 = sbr.rel (%p160) target = $region24
        $region23: #{tpu_custom_call.1} parent=15 // pred_region
          %s163 = sand.u32 %s75, 1
          %s164 = scalar_lea.sflag [#allocation7], %s163
          %s165 = sand.u32 %s75, 1
          %s166 = smul.addr %s165, 16
          %s167 = scalar_lea.vmem [#allocation6], %s166
          %s168 = smul.u32 2, %s23
          %170 = vsyncadd %s164, 0
          %s171 = smul.addr %s22, 2
          %s172 = sadd.s32 %s168, %s171
          %s173 = smul.addr %s21, 2
          %s174 = sadd.s32 %s172, %s173
          %s175 = smul.addr %s174, 8
          %s176 = scalar_lea.hbm %s1, %s175
          %s178 = sshll.u32 %s176, 4
          %s179 = int_to_ptr.hbm [resolvable:$true] %s178
          %s180 = sshll.u32 %s167, 4
          %s181 = int_to_ptr.vmem [resolvable:$true] %s180
          %183 = dma.hbm_to_vmem [thread:$0]  %s179, 256, %s181, %s164
        $region24: #{tpu_custom_call.1} parent=15 // pred_fallthru
          _
      $region16: #{tpu_custom_call.1} parent=5 // pred_fallthru
        _
      %p184 = scmp.le.s32.totalorder 1, %s14
      %p185 = scmp.lt.s32.totalorder %s14, 3
      %p186 = pnand %p184, %p185
      %p187 = pneg %p186
      // Predicated region
      $region25: #{tpu_custom_call.1} parent=5 // pred_check
        _
      $region26: #{tpu_custom_call.1} parent=5 // pred_check_branch
        %189 = sbr.rel (%p186) target = $region28
      $region27: #{tpu_custom_call.1} parent=5 // pred_region
        %s190 = ssub.s32 %s14, 1
        %s191 = sand.u32 %s48, 1
        %s192 = scalar_lea.sflag [#allocation5], %s191
        %s193 = sand.u32 %s48, 1
        %s194 = smul.addr %s193, 8
        %s195 = scalar_lea.vmem [#allocation4], %s194
        // Predicated region
        $region29: #{tpu_custom_call.1} parent=27 // pred_check
          %p196 = pneg %p61
        $region30: #{tpu_custom_call.1} parent=27 // pred_check_branch
          %198 = sbr.rel (%p196) target = $region32
        $region31: #{tpu_custom_call.1} parent=27 // pred_region
          %200 = dma.done %s192, 128
        $region32: #{tpu_custom_call.1} parent=27 // pred_fallthru
          _
        %s201 = sand.u32 %s78, 1
        %s202 = scalar_lea.sflag [#allocation7], %s201
        %s203 = sand.u32 %s78, 1
        %s204 = smul.addr %s203, 16
        %s205 = scalar_lea.vmem [#allocation6], %s204
        // Predicated region
        $region33: #{tpu_custom_call.1} parent=27 // pred_check
          %p206 = pneg %p91
        $region34: #{tpu_custom_call.1} parent=27 // pred_check_branch
          %208 = sbr.rel (%p206) target = $region36
        $region35: #{tpu_custom_call.1} parent=27 // pred_region
          %210 = dma.done %s202, 256
        $region36: #{tpu_custom_call.1} parent=27 // pred_fallthru
          _
        %s211 = sand.u32 %s48, 1
        %s212 = scalar_lea.sflag [#allocation5], %s211
        %s213 = sand.u32 %s48, 1
        %s214 = smul.addr %s213, 8
        %s215 = scalar_lea.vmem [#allocation4], %s214
        %p216 = pneg %p61
        %p217 = pneg %p58
        %s218 = sand.u32 %s78, 1
        %s219 = scalar_lea.sflag [#allocation7], %s218
        %s220 = sand.u32 %s78, 1
        %s221 = smul.addr %s220, 16
        %s222 = scalar_lea.vmem [#allocation6], %s221
        %p223 = pneg %p91
        %p224 = pneg %p88
        %p225 = pneg %p119
        %p226 = pneg %p116
        %p227 = scmp.lt.s32.totalorder %s24, 1
        %s228 = scalar_select %p227, %s24, 1
        %p229 = scmp.lt.s32.totalorder %s25, 0
        %s230 = scalar_select %p229, %s25, 0
        %s231 = sadd.s32 %s230, %s228
        %s232 = smul.addr %s231, 8
        %s233 = scalar_lea.vmem %s2, %s232
        %s234 = smul.u32 2, %s26
        %s235 = smul.u32 2, %s26
        %p236 = scmp.lt.s32.totalorder %s24, 1
        %s237 = scalar_select %p236, %s24, 1
        %p238 = scmp.lt.s32.totalorder %s25, 0
        %s239 = scalar_select %p238, %s25, 0
        %s240 = sadd.s32 %s239, %s237
        %s241 = smul.addr %s240, 8
        %s242 = scalar_lea.vmem %s2, %s241
        %p243 = scmp.eq.s32.totalorder %s26, 0
        // Predicated region
        $region37: #{tpu_custom_call.1} parent=27 // pred_check
          %p244 = pneg %p243
        $region38: #{tpu_custom_call.1} parent=27 // pred_check_branch
          %246 = sbr.rel (%p244) target = $region40
        $region39: #{tpu_custom_call.1} parent=27 // pred_region
          %vm247 = vcmask 31744
          %248 = vst.msk [vmem:[#allocation2] sm:$0xff] %vm247, 0.0
          %vm249 = vcmask 7168
          %250 = vst.msk [vmem:[#allocation3] sm:$0xff] %vm249, 0.0
        $region40: #{tpu_custom_call.1} parent=27 // pred_fallthru
          _
        %v251 = vld [vmem:[%s195] sm:$0xff]
        %v252 = vld [vmem:[%s205] sm:$0xff]
        %v253 = vld [vmem:[%s205 + $0x8] sm:$0xff]
        %vm254 = vcmp.gt.f32.partialorder %v252, 0.0
        %vm255 = vcmp.gt.f32.partialorder %v253, 0.0
        %v256 = vsel %vm254, 1.0, 0.0
        %v257 = vsel %vm255, 1.0, 0.0
        %v258 = vld [vmem:[#allocation3] sm:$0xff]
        %v259 = vadd.f32 %v256, %v257
        %260 = vadd.xlane.f32.xlu0 %v259
        %v261 = vpop.xlane.xlu0 %260
        %v262 = vadd.f32 %v258, %v261
        %vm263 = vcmask 7168
        %264 = vst.msk [vmem:[#allocation3] sm:$0xff] %vm263, %v262
        %v265 = vsel %vm254, 1, 0
        %v266 = vsel %vm255, 1, 0
        %v267 = vcvt.s32.f32 %v265
        %v268 = vcvt.s32.f32 %v266
        %v269 = vld [vmem:[#allocation2] sm:$0xff]
        %271 = vst [vmem:[#allocation1] ss:$2 sm:$0xff] %v251
        %v272 = vld.sshfl [vmem:[#allocation1] sm:$0xff pattern:$0x75316420]
        %v273 = vld.sshfl [vmem:[#allocation1 + $0x8] sm:$0xff pattern:$0x75316420]
        %276 = vmatpush.xpose.msra.mxu0 0.0
        %277 = vmatpush.xpose.msra.mxu0 0.0
        %278 = vmatpush.xpose.msra.mxu0 0.0
        %279 = vmatpush.xpose.msra.mxu0 0.0
        %280 = vmatpush.xpose.msra.mxu0 0.0
        %281 = vmatpush.xpose.msra.mxu0 0.0
        %282 = vmatpush.xpose.msra.mxu0 0.0
        %283 = vmatpush.xpose.msra.mxu0 0.0
        %284 = vmatpush.xpose.msra.mxu0 0.0
        %285 = vmatpush.xpose.msra.mxu0 0.0
        %286 = vmatpush.xpose.msra.mxu0 0.0
        %287 = vmatpush.xpose.msra.mxu0 0.0
        %288 = vmatpush.xpose.msra.mxu0 0.0
        %289 = vmatpush.xpose.msra.mxu0 0.0
        %290 = vmatpush.xpose.msra.mxu0 0.0
        %291 = vmatpush.xpose.msra.mxu0 %v272
        %292 = vmatmul.f32.gmra.mxu0 %v267
        %v293 = vpop.f32.mrf.mxu0
        %v294 = vadd.f32 0.0, %v293
        %295 = vdwg.mxu0
        %296 = vmatpush.xpose.msra.mxu0 0.0
        %297 = vmatpush.xpose.msra.mxu0 0.0
        %298 = vmatpush.xpose.msra.mxu0 0.0
        %299 = vmatpush.xpose.msra.mxu0 0.0
        %300 = vmatpush.xpose.msra.mxu0 0.0
        %301 = vmatpush.xpose.msra.mxu0 0.0
        %302 = vmatpush.xpose.msra.mxu0 0.0
        %303 = vmatpush.xpose.msra.mxu0 0.0
        %304 = vmatpush.xpose.msra.mxu0 0.0
        %305 = vmatpush.xpose.msra.mxu0 0.0
        %306 = vmatpush.xpose.msra.mxu0 0.0
        %307 = vmatpush.xpose.msra.mxu0 0.0
        %308 = vmatpush.xpose.msra.mxu0 0.0
        %309 = vmatpush.xpose.msra.mxu0 0.0
        %310 = vmatpush.xpose.msra.mxu0 0.0
        %311 = vmatpush.xpose.msra.mxu0 %v273
        %312 = vmatmul.f32.gmra.mxu0 %v268
        %v313 = vpop.f32.mrf.mxu0
        %v314 = vadd.f32 %v294, %v313
        %315 = vdwg.mxu0
        %v316 = vadd.f32 %v269, %v314
        %vm317 = vcmask 31744
        %318 = vst.msk [vmem:[#allocation2] sm:$0xff] %vm317, %v316
        // Predicated region
        $region41: #{tpu_custom_call.1} parent=27 // pred_check
          %p319 = pneg %p243
        $region42: #{tpu_custom_call.1} parent=27 // pred_check_branch
          %321 = sbr.rel (%p319) target = $region44
        $region43: #{tpu_custom_call.1} parent=27 // pred_region
          %v322 = vld [vmem:[#allocation3] sm:$0xff]
          %v323 = vadd.f32 %v322, 1e-08
          %v324 = vrcp.pop %v323
          %v325 = vmul.f32 %v323, %v324
          %v326 = vsub.f32 1.0, %v325
          %v327 = vmul.f32 %v324, %v326
          %v328 = vadd.f32 %v324, %v327
          %vm329 = vweird.f32 %v323
          %vm330 = vweird.f32 %v324
          %vm331 = vmor %vm329, %vm330
          %v332 = vsel %vm331, %v324, %v328
          %v333 = vand.u32 2147483647, %v323
          %vm334 = vcmp.eq.f32.partialorder %v333, 8.507059e+37
          %v335 = vand.u32 %v323, 2147483648
          %v336 = vor.u32 1.1754944e-38, %v335
          %v337 = vsel %vm334, %v336, %v332
          %v338 = vld [vmem:[#allocation2] sm:$0xff]
          %340 = vset.pattern.permute.xlu0 0
          %341 = vperm.xlu0 %340, %v337
          %v342 = vpop.permute.xlu0 %341
          %v344 = vmul.f32 %v338, %v342
          %345 = vst.msk [vmem:[%s242] sm:$0xff] %vm317, %v344
        $region44: #{tpu_custom_call.1} parent=27 // pred_fallthru
          _
        %p346 = scmp.lt.s32.totalorder %s24, 1
        %s347 = scalar_select %p346, %s24, 1
        %p348 = scmp.lt.s32.totalorder %s25, 0
        %s349 = scalar_select %p348, %s25, 0
        %s350 = sadd.s32 %s349, %s347
        %s351 = smul.addr %s350, 8
        %s352 = scalar_lea.vmem %s2, %s351
        // Predicated region
        $region45: #{tpu_custom_call.1} parent=27 // pred_check
          %p353 = pneg %p116
        $region46: #{tpu_custom_call.1} parent=27 // pred_check_branch
          %355 = sbr.rel (%p353) target = $region48
        $region47: #{tpu_custom_call.1} parent=27 // pred_region
          _
        $region48: #{tpu_custom_call.1} parent=27 // pred_fallthru
          _
      $region28: #{tpu_custom_call.1} parent=5 // pred_fallthru
        _
      %p356 = scmp.le.s32.totalorder 2, %s14
      // Predicated region
      $region49: #{tpu_custom_call.1} parent=5 // pred_check
        %p357 = pneg %p356
      $region50: #{tpu_custom_call.1} parent=5 // pred_check_branch
        %359 = sbr.rel (%p357) target = $region52
      $region51: #{tpu_custom_call.1} parent=5 // pred_region
        %s360 = ssub.s32 %s14, 2
        // Predicated region
        $region53: #{tpu_custom_call.1} parent=51 // pred_check
          %p361 = pneg %p122
        $region54: #{tpu_custom_call.1} parent=51 // pred_check_branch
          %363 = sbr.rel (%p361) target = $region56
        $region55: #{tpu_custom_call.1} parent=51 // pred_region
          %p364 = scmp.lt.s32.totalorder %s27, 1
          %s365 = scalar_select %p364, %s27, 1
          %p366 = scmp.lt.s32.totalorder %s28, 0
          %s367 = scalar_select %p366, %s28, 0
          %s368 = sadd.s32 %s367, %s365
          %s369 = smul.addr %s368, 8
          %s370 = scalar_lea.vmem %s2, %s369
        $region56: #{tpu_custom_call.1} parent=51 // pred_fallthru
          _
      $region52: #{tpu_custom_call.1} parent=5 // pred_fallthru
        _
    $region6: #{tpu_custom_call.1} parent=1 // loop_footer
      %s18 = sadd.s32 1, %s14
    $region7: #{tpu_custom_call.1} parent=1 // loop_footer_branch
      %13 = sbr.rel target = $region3
    $region8: #{tpu_custom_call.1} parent=1 // loop_exit
      _
    %371 = vsyncpa [#allocation5], 1
    %s372 = scalar_lea.sflag [#allocation5], 1
    %373 = vsyncpa %s372, 1
    %374 = vsyncpa [#allocation7], 1
    %s375 = scalar_lea.sflag [#allocation7], 1
    %376 = vsyncpa %s375, 1

</llo_original>
